<compile_context>
chip_gen: v7x
topology: tpu7x:2x2x1
jax: 0.10.0
libtpu: 0.0.40
codegen_flags: <defaults>
</compile_context>

<pallas_src>
import jax
import jax.numpy as jnp
from jax.experimental import pallas as pl
from jax.experimental.pallas import tpu as pltpu


def _round_up(x: int, m: int) -> int:
    return ((x + m - 1) // m) * m


def _vmem_capacity_bytes() -> int:
    """Best-effort VMEM capacity query; conservative (v7x-sized) fallback."""
    try:
        return int(pltpu.get_tpu_info().vmem_capacity_bytes)
    except Exception:
        return 64 * 1024 * 1024


def _pick_tile(dim: int, cap: int, unit: int = 128) -> int:
    """Lane-dense tile (multiple of `unit`) <= cap, preferring exact divisors."""
    padded = _round_up(dim, unit)
    if padded <= cap:
        return padded
    for t in range(cap, unit - 1, -unit):
        if padded % t == 0:
            return t
    return cap


def _linear_kernel(x_ref, w_ref, b_ref, o_ref, acc_ref):
    # x_ref:   (tm, tk) VMEM -- activations tile
    # w_ref:   (tk, tn) VMEM -- weight tile, pre-transposed to (K, N) layout
    # b_ref:   (1,  tn) VMEM -- f32 bias tile (depends only on the N index)
    # o_ref:   (tm, tn) VMEM -- output tile
    # acc_ref: (tm, tn) VMEM scratch, f32 accumulator
    k = pl.program_id(2)

    @pl.when(k == 0)
    def _init():
        # Fold the bias into the init so the finalize branch is a pure cast.
        acc_ref[...] = jnp.broadcast_to(b_ref[...], acc_ref.shape)

    acc_ref[...] += jnp.dot(
        x_ref[...], w_ref[...], preferred_element_type=jnp.float32
    )

    @pl.when(k == pl.num_programs(2) - 1)
    def _finalize():
        o_ref[...] = acc_ref[...].astype(o_ref.dtype)


class PallasLinear:
    """y = x @ weight.T + bias with torch.nn.Linear semantics.

    Weight/bias are prepared (transpose + pad + optional cast) once at
    construction so the per-call path is a single pallas_call (plus an x pad
    / y slice only when the shapes actually need it).
    """

    def __init__(self, weight, bias, compute_dtype=None):
        D_out, D_in = weight.shape
        assert bias.shape == (D_out,), "bias/out-features mismatch"
        self._d_in, self._d_out = D_in, D_out
        self._compute_dtype = compute_dtype

        vmem = _vmem_capacity_bytes()
        if vmem >= 100 * 1024 * 1024:
            # v5e / v6e: 128 MiB VMEM -> large tiles, generous scoped limit.
            self._cap_m, cap_n, cap_k = 512, 512, 1024
            self._vmem_limit = 96 * 1024 * 1024
            self._small_vmem = False
        else:
            # v7x: 64 MiB VMEM, 2 TensorCores/chip -> smaller budget.
            self._cap_m, cap_n, cap_k = 512, 512, 512
            self._vmem_limit = 32 * 1024 * 1024
            self._small_vmem = True

        self._tn = _pick_tile(D_out, cap_n)
        self._tk = _pick_tile(D_in, cap_k)
        self._n_pad = _round_up(D_out, self._tn)
        self._k_pad = _round_up(D_in, self._tk)

        # ---- one-time parameter prep (hoisted out of the hot path) ----
        w_t = jnp.asarray(weight).T  # (D_in, D_out): standard MXU layout
        if (self._k_pad, self._n_pad) != (D_in, D_out):
            w_t = jnp.pad(
                w_t, ((0, self._k_pad - D_in), (0, self._n_pad - D_out))
            )
        if compute_dtype is not None:
            w_t = w_t.astype(compute_dtype)
        b_p = jnp.asarray(bias, jnp.float32)
        if self._n_pad != D_out:
            b_p = jnp.pad(b_p, (0, self._n_pad - D_out))
        self._w_p = jax.block_until_ready(w_t)
        self._b_p = jax.block_until_ready(b_p.reshape(1, self._n_pad))

        self._fwd = jax.jit(self._forward)

    def _forward(self, x, w_p, b_p):
        B, D_in = x.shape
        assert D_in == self._d_in, "input feature mismatch"
        out_dtype = x.dtype

        tn, tk = self._tn, self._tk
        K_pad, N_pad = self._k_pad, self._n_pad
        tm = min(self._cap_m, _round_up(B, 8))
        M_pad = _round_up(B, tm)

        # On dual-TensorCore / small-VMEM parts make sure at least one
        # "parallel" grid axis has >= 2 blocks so both cores get work.
        if self._small_vmem:
            while (M_pad // tm) * (N_pad // tn) < 2:
                cand = tn // 2
                if cand < 128 or cand % 128 != 0 or N_pad % cand != 0:
                    break
                tn = cand

        if self._compute_dtype is not None:
            x = x.astype(self._compute_dtype)
        if (M_pad, K_pad) != (B, D_in):
            x = jnp.pad(x, ((0, M_pad - B), (0, K_pad - D_in)))

        grid = (M_pad // tm, N_pad // tn, K_pad // tk)

        in_itemsize = jnp.dtype(x.dtype).itemsize
        cost = pl.CostEstimate(
            flops=2 * M_pad * K_pad * N_pad,
            transcendentals=0,
            bytes_accessed=(M_pad * K_pad + K_pad * N_pad) * in_itemsize
            + M_pad * N_pad * jnp.dtype(out_dtype).itemsize
            + N_pad * 4,
        )

        y_pad = pl.pallas_call(
            _linear_kernel,
            out_shape=jax.ShapeDtypeStruct((M_pad, N_pad), out_dtype),
            grid_spec=pltpu.PrefetchScalarGridSpec(
                num_scalar_prefetch=0,
                grid=grid,
                in_specs=[
                    # activations: follow (i, k)
                    pl.BlockSpec((tm, tk), lambda i, j, k: (i, k)),
                    # weight (pre-transposed to (K, N)): follow (k, j)
                    pl.BlockSpec((tk, tn), lambda i, j, k: (k, j)),
                    # bias: depends only on the N index
                    pl.BlockSpec((1, tn), lambda i, j, k: (0, j)),
                ],
                out_specs=pl.BlockSpec((tm, tn), lambda i, j, k: (i, j)),
                scratch_shapes=[pltpu.VMEM((tm, tn), jnp.float32)],
            ),
            compiler_params=pltpu.CompilerParams(
                dimension_semantics=("parallel", "parallel", "arbitrary"),
                vmem_limit_bytes=self._vmem_limit,
            ),
            cost_estimate=cost,
        )(x, w_p, b_p)

        if (M_pad, N_pad) != (B, self._d_out):
            y_pad = y_pad[:B, : self._d_out]
        return y_pad

    def __call__(self, x):
        return self._fwd(x, self._w_p, self._b_p)


if __name__ == "__main__":
    # Small shapes consistent with the module: batch=8, input_dim=32, output_dim=16.
    batch, input_dim, output_dim = 8, 32, 16

    key = jax.random.PRNGKey(0)
    kx, kw, kb = jax.random.split(key, 3)

    # Deterministic init mimicking torch.nn.Linear default:
    # U(-1/sqrt(in_features), +1/sqrt(in_features))
    bound = 1.0 / (input_dim ** 0.5)
    weight = jax.random.uniform(
        kw, (output_dim, input_dim), jnp.float32, minval=-bound, maxval=bound
    )
    bias = jax.random.uniform(
        kb, (output_dim,), jnp.float32, minval=-bound, maxval=bound
    )
    x = jax.random.normal(kx, (batch, input_dim), jnp.float32)

    layer = PallasLinear(weight, bias)  # one-time weight transpose/pad here
    y = layer(x)
    jax.block_until_ready(y)

    # Sanity check against pure-JAX reference.
    y_ref = x @ weight.T + bias
    assert y.shape == (batch, output_dim)
    assert jnp.allclose(y, y_ref, atol=1e-5, rtol=1e-5)

    print("KERNEL_OK")
</pallas_src>

<mosaic_0001>
module attributes {stable_mosaic.version = 11 : i64} {
  func.func @_linear_kernel(%arg0: i32, %arg1: i32, %arg2: i32, %arg3: memref<8x128xf32, #tpu.memory_space<vmem>>, %arg4: memref<128x128xf32, #tpu.memory_space<vmem>>, %arg5: memref<1x128xf32, #tpu.memory_space<vmem>>, %arg6: memref<8x128xf32, #tpu.memory_space<vmem>>, %arg7: memref<8x128xf32, #tpu.memory_space<vmem>>) attributes {dimension_semantics = [#tpu.dimension_semantics<parallel>, #tpu.dimension_semantics<parallel>, #tpu.dimension_semantics<arbitrary>], iteration_bounds = array<i64: 1, 1, 1>, scalar_prefetch = 0 : i64, scratch_operands = 1 : i64, tpu.core_type = #tpu.core_type<tc>, window_params = [{transform_indices = @transform_0, window_bounds = array<i64: 8, 128>}, {transform_indices = @transform_1, window_bounds = array<i64: 128, 128>}, {transform_indices = @transform_2, window_bounds = array<i64: 1, 128>}, {transform_indices = @transform_3, window_bounds = array<i64: 8, 128>}]} {
    %c0_i32 = arith.constant 0 : i32
    %0 = arith.cmpi eq, %arg2, %c0_i32 : i32
    %1 = arith.extui %0 : i1 to i32
    %c0_i32_0 = arith.constant 0 : i32
    %2 = arith.cmpi ne, %1, %c0_i32_0 : i32
    scf.if %2 {
      %c0_10 = arith.constant 0 : index
      %c0_11 = arith.constant 0 : index
      %12 = vector.load %arg5[%c0_10, %c0_11] : memref<1x128xf32, #tpu.memory_space<vmem>>, vector<1x128xf32>
      %13 = vector.shape_cast %12 : vector<1x128xf32> to vector<1x128xf32>
      %14 = vector.broadcast %13 : vector<1x128xf32> to vector<8x128xf32>
      %c0_12 = arith.constant 0 : index
      %c0_13 = arith.constant 0 : index
      %15 = vector.load %arg7[%c0_12, %c0_13] : memref<8x128xf32, #tpu.memory_space<vmem>>, vector<8x128xf32>
      tpu.vector_store %arg7[%c0_12, %c0_13], %14 {strides = array<i32>} : memref<8x128xf32, #tpu.memory_space<vmem>>, vector<8x128xf32>,
    } else {
    }
    %c0 = arith.constant 0 : index
    %c0_1 = arith.constant 0 : index
    %3 = vector.load %arg7[%c0, %c0_1] : memref<8x128xf32, #tpu.memory_space<vmem>>, vector<8x128xf32>
    %c0_2 = arith.constant 0 : index
    %c0_3 = arith.constant 0 : index
    %4 = vector.load %arg3[%c0_2, %c0_3] : memref<8x128xf32, #tpu.memory_space<vmem>>, vector<8x128xf32>
    %c0_4 = arith.constant 0 : index
    %c0_5 = arith.constant 0 : index
    %5 = vector.load %arg4[%c0_4, %c0_5] : memref<128x128xf32, #tpu.memory_space<vmem>>, vector<128x128xf32>
    %cst = arith.constant dense<0.000000e+00> : vector<8x128xf32>
    %6 = tpu.matmul %4, %5, %cst {dimension_numbers = #tpu.dot_dimension_numbers<[1], [0], [0], [1], [0, 0, 1, 1], [], []>} : vector<8x128xf32>, vector<128x128xf32>, vector<8x128xf32> -> vector<8x128xf32>
    %7 = arith.addf %3, %6 : vector<8x128xf32>
    %c0_6 = arith.constant 0 : index
    %c0_7 = arith.constant 0 : index
    %8 = vector.load %arg7[%c0_6, %c0_7] : memref<8x128xf32, #tpu.memory_space<vmem>>, vector<8x128xf32>
    tpu.vector_store %arg7[%c0_6, %c0_7], %7 {strides = array<i32>} : memref<8x128xf32, #tpu.memory_space<vmem>>, vector<8x128xf32>,
    %c0_i32_8 = arith.constant 0 : i32
    %9 = arith.cmpi eq, %arg2, %c0_i32_8 : i32
    %10 = arith.extui %9 : i1 to i32
    %c0_i32_9 = arith.constant 0 : i32
    %11 = arith.cmpi ne, %10, %c0_i32_9 : i32
    scf.if %11 {
      %c0_10 = arith.constant 0 : index
      %c0_11 = arith.constant 0 : index
      %12 = vector.load %arg7[%c0_10, %c0_11] : memref<8x128xf32, #tpu.memory_space<vmem>>, vector<8x128xf32>
      %c0_12 = arith.constant 0 : index
      %c0_13 = arith.constant 0 : index
      %13 = vector.load %arg6[%c0_12, %c0_13] : memref<8x128xf32, #tpu.memory_space<vmem>>, vector<8x128xf32>
      tpu.vector_store %arg6[%c0_12, %c0_13], %12 {strides = array<i32>} : memref<8x128xf32, #tpu.memory_space<vmem>>, vector<8x128xf32>,
    } else {
    }
    return
  }
  func.func @transform_0(%arg0: i32, %arg1: i32, %arg2: i32) -> (i32, i32) {
    %c0_i32 = arith.constant 0 : i32
    return %arg0, %arg2 : i32, i32
  }
  func.func @transform_1(%arg0: i32, %arg1: i32, %arg2: i32) -> (i32, i32) {
    %c0_i32 = arith.constant 0 : i32
    return %arg2, %arg1 : i32, i32
  }
  func.func @transform_2(%arg0: i32, %arg1: i32, %arg2: i32) -> (i32, i32) {
    %c0_i32 = arith.constant 0 : i32
    %c0_i32_0 = arith.constant 0 : i32
    return %c0_i32, %arg1 : i32, i32
  }
  func.func @transform_3(%arg0: i32, %arg1: i32, %arg2: i32) -> (i32, i32) {
    %c0_i32 = arith.constant 0 : i32
    return %arg0, %arg1 : i32, i32
  }
}

</mosaic_0001>

<llo_original>
// kernel: _forward.1
$region0: #{_forward.1}
  #allocation0 [shape = 'u32[]', space=smem, size = 0x4, offset = 0x4, fixed_abs, tag = 'smem constant byte address 0x4 - core index']
  #allocation1 [shape = 'u32[144,128]{1,0:T(1,128)}', space=vmem, size = 0x12000, scoped, tag = 'internal scratch']
  #allocation2 [shape = 'f32[8,128]{1,0:T(8,128)}', space=vmem, size = 0x1000, scoped, tag = 'scratch operand']
  %s0 = inlined_call_operand.vmem [shape: f32[8,128], index: 0, kind: input, shape index: {}]
  %s1 = inlined_call_operand.hbm [shape: f32[128,128], index: 1, kind: input, shape index: {}]
  %s2 = inlined_call_operand.vmem [shape: f32[1,128], index: 2, kind: input, shape index: {}]
  %s3 = inlined_call_operand.hbm [shape: f32[8,128], index: 3, kind: output, shape index: {}]
  %s4 = sld [smem:[#allocation0]]
  $region34: #{_forward.1} parent=0
    _
  %s6 = ssub.s32 1, %s4
  %s7 = scalar_select 0, %s6, %s4
  $region1: #{_forward.1} parent=0
    #allocation3 [shape = 'u8[65536]{0}', space=vmem, size = 0x10000, scoped, tag = 'input window, operand 1, single buffered']
    #allocation4 [shape = 's32[1]{0}', space=sflag, size = 0x4, scoped, tag = 'scoped memory for _forward.1']
    #allocation5 [shape = 's32[1]{0}', space=sflag, size = 0x4, scoped, tag = 'scoped memory for _forward.1']
    #allocation6 [shape = 'u8[4096]{0}', space=vmem, size = 0x1000, scoped, tag = 'output window, operand 0, single buffered']
    %8 = vsyncpa [#allocation4], 0
    %9 = vsyncpa [#allocation5], 0
    // Predicated region
    $region2: #{_forward.1} parent=1 // pred_check
      _
    $region3: #{_forward.1} parent=1 // pred_check_branch
      %11 = sbr.rel (0) target = $region5
    $region4: #{_forward.1} parent=1 // pred_region
      _
    $region5: #{_forward.1} parent=1 // pred_fallthru
      _
    // Predicated region
    $region6: #{_forward.1} parent=1 // pred_check
      _
    $region7: #{_forward.1} parent=1 // pred_check_branch
      %13 = sbr.rel (0) target = $region9
    $region8: #{_forward.1} parent=1 // pred_region
      %s15 = ssub.s32 2048, 2048
      %16 = vsyncadd [#allocation4], %s15
      %s17 = sshll.u32 [#allocation3], 4
      %s18 = int_to_ptr.vmem [resolvable:$true] %s17
      %23 = dma.hbm_to_vmem [thread:$0]  %s1, 2048, %s18, [#allocation4], 128, 128, 8
    $region9: #{_forward.1} parent=1 // pred_fallthru
      _
    // Predicated region
    $region10: #{_forward.1} parent=1 // pred_check
      _
    $region11: #{_forward.1} parent=1 // pred_check_branch
      %25 = sbr.rel (0) target = $region13
    $region12: #{_forward.1} parent=1 // pred_region
      _
    $region13: #{_forward.1} parent=1 // pred_fallthru
      _
    // Predicated region
    $region14: #{_forward.1} parent=1 // pred_check
      _
    $region15: #{_forward.1} parent=1 // pred_check_branch
      %27 = sbr.rel (0) target = $region17
    $region16: #{_forward.1} parent=1 // pred_region
      %28 = dma.done [#allocation4], 2048
    $region17: #{_forward.1} parent=1 // pred_fallthru
      _
    %p29 = scmp.eq.s32.totalorder 0, 0
    // Predicated region
    $region18: #{_forward.1} parent=1 // pred_check
      %p30 = pneg %p29
    $region19: #{_forward.1} parent=1 // pred_check_branch
      %32 = sbr.rel (%p30) target = $region21
    $region20: #{_forward.1} parent=1 // pred_region
      %v33 = vld [vmem:[%s2] sm:$0x1]
      %v35 = vlaneseq
      %v36 = vshrl.u32 %v35, 7
      %v37 = vsub.s32 0, %v36
      %v38 = vrot.slane %v33, %v37
      %40 = vst [vmem:[#allocation2] sm:$0xff] %v38
    $region21: #{_forward.1} parent=1 // pred_fallthru
      _
    %v41 = vld [vmem:[#allocation2] sm:$0xff]
    %v42 = vld [vmem:[%s0] sm:$0xff]
    %v43 = vld [vmem:[#allocation3] sm:$0xff]
    %v44 = vld [vmem:[#allocation3 + $0x8] sm:$0xff]
    %v45 = vld [vmem:[#allocation3 + $0x10] sm:$0xff]
    %v46 = vld [vmem:[#allocation3 + $0x18] sm:$0xff]
    %v47 = vld [vmem:[#allocation3 + $0x20] sm:$0xff]
    %v48 = vld [vmem:[#allocation3 + $0x28] sm:$0xff]
    %v49 = vld [vmem:[#allocation3 + $0x30] sm:$0xff]
    %v50 = vld [vmem:[#allocation3 + $0x38] sm:$0xff]
    %v51 = vld [vmem:[#allocation3 + $0x40] sm:$0xff]
    %v52 = vld [vmem:[#allocation3 + $0x48] sm:$0xff]
    %v53 = vld [vmem:[#allocation3 + $0x50] sm:$0xff]
    %v54 = vld [vmem:[#allocation3 + $0x58] sm:$0xff]
    %v55 = vld [vmem:[#allocation3 + $0x60] sm:$0xff]
    %v56 = vld [vmem:[#allocation3 + $0x68] sm:$0xff]
    %v57 = vld [vmem:[#allocation3 + $0x70] sm:$0xff]
    %v58 = vld [vmem:[#allocation3 + $0x78] sm:$0xff]
    %59 = vmatprep.subr.mxu0 0.0
    %60 = vmatpush1.msra.mxu0 %v43
    %61 = vmatprep.subr.mxu0 0.0
    %62 = vmatpush1.msra.mxu0 %v44
    %63 = vmatprep.subr.mxu0 0.0
    %64 = vmatpush1.msra.mxu0 %v45
    %65 = vmatprep.subr.mxu0 0.0
    %66 = vmatpush1.msra.mxu0 %v46
    %67 = vmatprep.subr.mxu0 0.0
    %68 = vmatpush1.msra.mxu0 %v47
    %69 = vmatprep.subr.mxu0 0.0
    %70 = vmatpush1.msra.mxu0 %v48
    %71 = vmatprep.subr.mxu0 0.0
    %72 = vmatpush1.msra.mxu0 %v49
    %73 = vmatprep.subr.mxu0 0.0
    %74 = vmatpush1.msra.mxu0 %v50
    %75 = vmatprep.subr.mxu0 0.0
    %76 = vmatpush1.msra.mxu0 %v51
    %77 = vmatprep.subr.mxu0 0.0
    %78 = vmatpush1.msra.mxu0 %v52
    %79 = vmatprep.subr.mxu0 0.0
    %80 = vmatpush1.msra.mxu0 %v53
    %81 = vmatprep.subr.mxu0 0.0
    %82 = vmatpush1.msra.mxu0 %v54
    %83 = vmatprep.subr.mxu0 0.0
    %84 = vmatpush1.msra.mxu0 %v55
    %85 = vmatprep.subr.mxu0 0.0
    %86 = vmatpush1.msra.mxu0 %v56
    %87 = vmatprep.subr.mxu0 0.0
    %88 = vmatpush1.msra.mxu0 %v57
    %89 = vmatprep.subr.mxu0 0.0
    %90 = vmatpush1.msra.mxu0 %v58
    %91 = vmatprep.subr.mxu0 0.0
    %92 = vmatpush1.msra.mxu0 0.0
    %93 = vmatprep.subr.mxu0 0.0
    %94 = vmatpush1.msra.mxu0 0.0
    %95 = vmatprep.subr.mxu0 0.0
    %96 = vmatpush1.msra.mxu0 0.0
    %97 = vmatprep.subr.mxu0 0.0
    %98 = vmatpush1.msra.mxu0 0.0
    %99 = vmatprep.subr.mxu0 0.0
    %100 = vmatpush1.msra.mxu0 0.0
    %101 = vmatprep.subr.mxu0 0.0
    %102 = vmatpush1.msra.mxu0 0.0
    %103 = vmatprep.subr.mxu0 0.0
    %104 = vmatpush1.msra.mxu0 0.0
    %105 = vmatprep.subr.mxu0 0.0
    %106 = vmatpush1.msra.mxu0 0.0
    %107 = vmatprep.subr.mxu0 0.0
    %108 = vmatpush1.msra.mxu0 0.0
    %109 = vmatprep.subr.mxu0 0.0
    %110 = vmatpush1.msra.mxu0 0.0
    %111 = vmatprep.subr.mxu0 0.0
    %112 = vmatpush1.msra.mxu0 0.0
    %113 = vmatprep.subr.mxu0 0.0
    %114 = vmatpush1.msra.mxu0 0.0
    %115 = vmatprep.subr.mxu0 0.0
    %116 = vmatpush1.msra.mxu0 0.0
    %117 = vmatprep.subr.mxu0 0.0
    %118 = vmatpush1.msra.mxu0 0.0
    %119 = vmatprep.subr.mxu0 0.0
    %120 = vmatpush1.msra.mxu0 0.0
    %121 = vmatprep.subr.mxu0 0.0
    %122 = vmatpush1.msra.mxu0 0.0
    %123 = vmatprep.mubr.f32.mxu0 0.0
    %124 = vmatmul.mubr.f32.gmra.mrb[0].mxu0 %v42
    %v125 = vpop.f32.mrb[0].mxu0
    %v126 = vadd.f32 0.0, %v125
    %v127 = vpop.f32.mrb[0].mxu0
    %128 = vdwg.mxu0
    %v129 = vadd.f32 %v41, %v126
    %130 = vst [vmem:[#allocation2] sm:$0xff] %v129
    // Predicated region
    $region22: #{_forward.1} parent=1 // pred_check
      %p131 = pneg %p29
    $region23: #{_forward.1} parent=1 // pred_check_branch
      %133 = sbr.rel (%p131) target = $region25
    $region24: #{_forward.1} parent=1 // pred_region
      %v134 = vld [vmem:[#allocation2] sm:$0xff]
      %135 = vst [vmem:[#allocation6] sm:$0xff] %v134
    $region25: #{_forward.1} parent=1 // pred_fallthru
      _
    // Predicated region
    $region26: #{_forward.1} parent=1 // pred_check
      _
    $region27: #{_forward.1} parent=1 // pred_check_branch
      %137 = sbr.rel (0) target = $region29
    $region28: #{_forward.1} parent=1 // pred_region
      %s139 = ssub.s32 128, 128
      %140 = vsyncadd [#allocation5], %s139
      %s142 = sshll.u32 [#allocation6], 4
      %s143 = int_to_ptr.vmem [resolvable:$true] %s142
      %145 = dma.vmem_to_hbm [thread:$0]  %s143, 128, %s3, [#allocation5]
    $region29: #{_forward.1} parent=1 // pred_fallthru
      _
    // Predicated region
    $region30: #{_forward.1} parent=1 // pred_check
      _
    $region31: #{_forward.1} parent=1 // pred_check_branch
      %147 = sbr.rel (0) target = $region33
    $region32: #{_forward.1} parent=1 // pred_region
      %148 = dma.done [#allocation5], 128
    $region33: #{_forward.1} parent=1 // pred_fallthru
      _
    %149 = vsyncpa [#allocation4], 1
    %150 = vsyncpa [#allocation5], 1

</llo_original>
